<compile_context>
chip_gen: v7x
topology: tpu7x:2x2x1
jax: 0.10.0
libtpu: 0.0.40
codegen_flags: <defaults>
</compile_context>

<pallas_src>
import functools

import jax
import jax.numpy as jnp
from jax import lax
from jax.experimental import pallas as pl
from jax.experimental.pallas import tpu as pltpu

_LN_EPS = 1e-12


def _round_up(x, m):
    return ((x + m - 1) // m) * m


def _vmem_capacity_bytes():
    try:
        return int(pltpu.get_tpu_info().vmem_capacity_bytes)
    except Exception:
        return 64 * 1024 * 1024  # conservative fallback (v7x per-core VMEM)


def _layernorm(y, gamma, beta, c2_real, c2_pad):
    """Row-wise LayerNorm over the last dim; masked to c2_real when padded."""
    if c2_real == c2_pad:
        mean = jnp.mean(y, axis=-1, keepdims=True)
        centered = y - mean
        var = jnp.mean(centered * centered, axis=-1, keepdims=True)
    else:
        mask = lax.broadcasted_iota(jnp.int32, y.shape, y.ndim - 1) < c2_real
        inv_n = 1.0 / float(c2_real)
        mean = jnp.sum(jnp.where(mask, y, 0.0), axis=-1, keepdims=True) * inv_n
        centered = y - mean
        cm = jnp.where(mask, centered, 0.0)
        var = jnp.sum(cm * cm, axis=-1, keepdims=True) * inv_n
    return centered * lax.rsqrt(var + _LN_EPS) * gamma + beta


def _fr_resident_kernel(x_ref, w_ref, p_ref, o_ref, *, c2_real, c2_pad):
    # x_ref: (TM, C1) row tile (pipelined, double-buffered).
    # w_ref: (C1, C2p) full fc weight, resident in VMEM.
    # p_ref: (3,  C2p) fused [bias, gamma, beta] (f32), resident in VMEM.
    # o_ref: (TM, C2p) output tile.
    y = jnp.dot(x_ref[...], w_ref[...], preferred_element_type=jnp.float32)
    p = p_ref[...]
    y = y + p[0:1, :]                                   # fc bias
    o_ref[...] = _layernorm(y, p[1:2, :], p[2:3, :],
                            c2_real, c2_pad).astype(o_ref.dtype)


def _fr_ktiled_kernel(x_ref, w_ref, p_ref, o_ref, acc_ref, *, c2_real, c2_pad):
    # Grid: (row tiles, K tiles); K is the last ("arbitrary") axis.
    # x_ref: (TM, TK) tile; w_ref: (TK, C2p) streamed weight slab;
    # acc_ref: (TM, C2p) f32 VMEM accumulator.
    k = pl.program_id(1)

    @pl.when(k == 0)
    def _():
        acc_ref[...] = jnp.zeros_like(acc_ref)

    acc_ref[...] += jnp.dot(x_ref[...], w_ref[...],
                            preferred_element_type=jnp.float32)

    @pl.when(k == pl.num_programs(1) - 1)
    def _():
        p = p_ref[...]
        y = acc_ref[...] + p[0:1, :]
        o_ref[...] = _layernorm(y, p[1:2, :], p[2:3, :],
                                c2_real, c2_pad).astype(o_ref.dtype)


def _pick_row_tile(requested, n, fixed_bytes, per_row_bytes, budget_bytes):
    """Largest multiple-of-8 row tile fitting the VMEM budget, >= 2 grid steps."""
    avail = max(budget_bytes - fixed_bytes, 8 * per_row_bytes)
    tm = min(int(requested), int(avail // per_row_bytes), _round_up(n, 8))
    tm = max(8, (tm // 8) * 8)
    # Guarantee >= 2 row-grid steps so v7x's 2 TensorCores both get work.
    while tm > 8 and pl.cdiv(n, tm) < 2:
        tm = max(8, ((tm // 2) // 8) * 8)
    return tm


def _pick_k_tile(c1, max_tk):
    """Largest 128-multiple K tile that divides C1 (no garbage in the reduction)."""
    start = (min(int(max_tk), int(c1)) // 128) * 128
    for tk in range(start, 0, -128):
        if c1 % tk == 0:
            return tk
    return None


def feature_resizer(encoder_features, w, b, gamma, beta, *,
                    row_tile=None, force_k_tiling=False, max_k_tile=512):
    """encoder_features: (..., C1) -> (..., C2); fc + LayerNorm (+ identity dropout).

    Implements the do_ln=True configuration of the PyTorch FeatureResizer
    (dropout is identity in eval mode).  `w` is the fc weight stored as
    (C1, C2), i.e. already transposed w.r.t. PyTorch's (C2, C1).
    """
    *lead, c1 = encoder_features.shape
    c2 = w.shape[1]
    x2d = encoder_features.reshape(-1, c1)
    n = x2d.shape[0]

    # --- dtype: run the matmul on the activation dtype (native MXU path). ---
    x_dtype = encoder_features.dtype
    w = w.astype(x_dtype)
    x_b = jnp.dtype(x_dtype).itemsize
    w_b = jnp.dtype(w.dtype).itemsize
    out_b = x_b

    # --- lane-dense output: pad C2 columns once (params only, no x/out pad). ---
    c2_pad = _round_up(c2, 128)
    if c2_pad != c2:
        w = jnp.pad(w, ((0, 0), (0, c2_pad - c2)))
    params = jnp.zeros((3, c2_pad), jnp.float32)
    params = params.at[0, :c2].set(b.reshape(-1).astype(jnp.float32))
    params = params.at[1, :c2].set(gamma.reshape(-1).astype(jnp.float32))
    params = params.at[2, :c2].set(beta.reshape(-1).astype(jnp.float32))

    # --- generation-aware VMEM limit and working-set budget. ---
    vmem_cap = _vmem_capacity_bytes()
    vmem_limit = max(min(vmem_cap // 2, 100 * 1024 * 1024), 32 * 1024 * 1024)
    budget = vmem_limit - 8 * 1024 * 1024          # headroom for Mosaic scratch
    if row_tile is None:
        row_tile = 1024 if vmem_cap > 64 * 1024 * 1024 else 256

    w_resident = c1 * c2_pad * w_b
    params_bytes = 3 * c2_pad * 4

    use_k = force_k_tiling or (w_resident > budget // 2)
    tk = _pick_k_tile(c1, max_k_tile) if use_k else None
    if use_k and tk is None:
        # TODO(synk): C1 has no 128-multiple divisor; fall back to the
        # resident-weight path (may exceed the VMEM budget for huge C1*C2).
        use_k = False

    if not use_k:
        # fixed: resident weight + params.  per-row (double-buffered x/out
        # tiles + f32 matmul result + centered LN copy).
        fixed = w_resident + params_bytes
        per_row = 2 * c1 * x_b + 2 * c2_pad * out_b + 2 * c2_pad * 4
        tm = _pick_row_tile(row_tile, n, fixed, per_row, budget)
        kernel = functools.partial(_fr_resident_kernel, c2_real=c2, c2_pad=c2_pad)
        out = pl.pallas_call(
            kernel,
            out_shape=jax.ShapeDtypeStruct((n, c2_pad), x_dtype),
            grid_spec=pltpu.PrefetchScalarGridSpec(
                num_scalar_prefetch=0,
                grid=(pl.cdiv(n, tm),),
                in_specs=[
                    pl.BlockSpec((tm, c1), lambda i: (i, 0)),
                    pl.BlockSpec(memory_space=pltpu.MemorySpace.VMEM),
                    pl.BlockSpec(memory_space=pltpu.MemorySpace.VMEM),
                ],
                out_specs=pl.BlockSpec((tm, c2_pad), lambda i: (i, 0)),
            ),
            compiler_params=pltpu.CompilerParams(
                dimension_semantics=("parallel",),
                vmem_limit_bytes=vmem_limit,
            ),
        )(x2d, w, params)
    else:
        # K-tiled: stream (tk, C2p) weight slabs, accumulate in f32 VMEM.
        fixed = params_bytes + 2 * tk * c2_pad * w_b
        per_row = (2 * tk * x_b + 2 * c2_pad * out_b
                   + c2_pad * 4            # f32 accumulator
                   + 2 * c2_pad * 4)       # f32 dot result + centered copy
        tm = _pick_row_tile(row_tile, n, fixed, per_row, budget)
        kernel = functools.partial(_fr_ktiled_kernel, c2_real=c2, c2_pad=c2_pad)
        out = pl.pallas_call(
            kernel,
            out_shape=jax.ShapeDtypeStruct((n, c2_pad), x_dtype),
            grid_spec=pltpu.PrefetchScalarGridSpec(
                num_scalar_prefetch=0,
                grid=(pl.cdiv(n, tm), c1 // tk),
                in_specs=[
                    pl.BlockSpec((tm, tk), lambda i, k: (i, k)),
                    pl.BlockSpec((tk, c2_pad), lambda i, k: (k, 0)),
                    pl.BlockSpec(memory_space=pltpu.MemorySpace.VMEM),
                ],
                out_specs=pl.BlockSpec((tm, c2_pad), lambda i, k: (i, 0)),
                scratch_shapes=[pltpu.VMEM((tm, c2_pad), jnp.float32)],
            ),
            compiler_params=pltpu.CompilerParams(
                dimension_semantics=("parallel", "arbitrary"),
                vmem_limit_bytes=vmem_limit,
            ),
        )(x2d, w, params)

    if c2_pad != c2:
        out = out[:, :c2]
    return out.reshape(*lead, c2)


def init_params(key, input_feat_size, output_feat_size):
    """Deterministic init mirroring nn.Linear / nn.LayerNorm parameter shapes."""
    k_w, k_b = jax.random.split(key)
    bound = 1.0 / (input_feat_size ** 0.5)
    # fc weight stored pre-transposed: (C1, C2)  (PyTorch stores (C2, C1)).
    w = jax.random.uniform(k_w, (input_feat_size, output_feat_size),
                           jnp.float32, minval=-bound, maxval=bound)
    b = jax.random.uniform(k_b, (1, output_feat_size),
                           jnp.float32, minval=-bound, maxval=bound)
    gamma = jnp.ones((1, output_feat_size), jnp.float32)
    beta = jnp.zeros((1, output_feat_size), jnp.float32)
    return w, b, gamma, beta


def _reference(x, w, b, gamma, beta):
    """Pure-JAX reference: fc + LayerNorm(eps=1e-12); dropout identity (eval)."""
    y = x @ w + b.reshape(-1)
    mean = y.mean(-1, keepdims=True)
    var = ((y - mean) ** 2).mean(-1, keepdims=True)
    return (y - mean) / jnp.sqrt(var + _LN_EPS) * gamma.reshape(-1) + beta.reshape(-1)


if __name__ == "__main__":
    key = jax.random.PRNGKey(0)

    def run_case(case_key, batch, seq, c1, c2, **kwargs):
        k_x, k_p = jax.random.split(case_key)
        x = jax.random.normal(k_x, (batch, seq, c1), jnp.float32)
        w, b, gamma, beta = init_params(k_p, c1, c2)
        out = feature_resizer(x, w, b, gamma, beta, **kwargs)
        out = jax.block_until_ready(out)
        ref = _reference(x, w, b, gamma, beta)
        assert out.shape == (batch, seq, c2)
        err = float(jnp.max(jnp.abs(out - ref)))
        assert jnp.allclose(out, ref, atol=1e-4, rtol=1e-4), f"max err {err}"
        return jax.random.fold_in(case_key, 1)

    # 1) Resident-weight path; N=14 rows exercises the partial trailing block
    #    (no wrapper padding), C2=128 is lane-dense.
    key = run_case(key, batch=2, seq=7, c1=32, c2=128)

    # 2) K-tiled accumulator path (forced): C1=256 -> two K steps of 128,
    #    N=18 rows -> partial trailing row block.
    key = run_case(key, batch=2, seq=9, c1=256, c2=128,
                   force_k_tiling=True, max_k_tile=128)

    # 3) C2 not a multiple of 128: columns padded once for lane-dense stores,
    #    LayerNorm reduction masked to the real C2, output columns sliced.
    key = run_case(key, batch=2, seq=7, c1=32, c2=96)

    print("KERNEL_OK")
</pallas_src>

<mosaic_0001>
module attributes {stable_mosaic.version = 11 : i64} {
  func.func @_fr_resident_kernel(%arg0: i32, %arg1: memref<8x32xf32, #tpu.memory_space<vmem>>, %arg2: memref<32x128xf32, #tpu.memory_space<vmem>>, %arg3: memref<3x128xf32, #tpu.memory_space<vmem>>, %arg4: memref<8x128xf32, #tpu.memory_space<vmem>>) attributes {dimension_semantics = [#tpu.dimension_semantics<parallel>], iteration_bounds = array<i64: 2>, scalar_prefetch = 0 : i64, scratch_operands = 0 : i64, tpu.core_type = #tpu.core_type<tc>, window_params = [{transform_indices = @transform_0, window_bounds = array<i64: 8, 32>}, {pipeline_mode = #tpu.pipeline_mode<synchronous>, transform_indices = @transform_1, window_bounds = array<i64: 32, 128>}, {pipeline_mode = #tpu.pipeline_mode<synchronous>, transform_indices = @transform_2, window_bounds = array<i64: 3, 128>}, {transform_indices = @transform_3, window_bounds = array<i64: 8, 128>}]} {
    %c0 = arith.constant 0 : index
    %c0_0 = arith.constant 0 : index
    %0 = vector.load %arg1[%c0, %c0_0] : memref<8x32xf32, #tpu.memory_space<vmem>>, vector<8x32xf32>
    %c0_1 = arith.constant 0 : index
    %c0_2 = arith.constant 0 : index
    %1 = vector.load %arg2[%c0_1, %c0_2] : memref<32x128xf32, #tpu.memory_space<vmem>>, vector<32x128xf32>
    %cst = arith.constant dense<0.000000e+00> : vector<8x128xf32>
    %2 = tpu.matmul %0, %1, %cst {dimension_numbers = #tpu.dot_dimension_numbers<[1], [0], [0], [1], [0, 0, 1, 1], [], []>} : vector<8x32xf32>, vector<32x128xf32>, vector<8x128xf32> -> vector<8x128xf32>
    %c0_3 = arith.constant 0 : index
    %c0_4 = arith.constant 0 : index
    %3 = vector.load %arg3[%c0_3, %c0_4] : memref<3x128xf32, #tpu.memory_space<vmem>>, vector<3x128xf32>
    %4 = vector.extract_strided_slice %3 {offsets = [0, 0], sizes = [1, 128], strides = [1, 1]} : vector<3x128xf32> to vector<1x128xf32>
    %5 = vector.broadcast %4 : vector<1x128xf32> to vector<8x128xf32>
    %6 = arith.addf %2, %5 : vector<8x128xf32>
    %7 = vector.extract_strided_slice %3 {offsets = [1, 0], sizes = [1, 128], strides = [1, 1]} : vector<3x128xf32> to vector<1x128xf32>
    %8 = vector.extract_strided_slice %3 {offsets = [2, 0], sizes = [1, 128], strides = [1, 1]} : vector<3x128xf32> to vector<1x128xf32>
    %cst_5 = arith.constant dense<0.000000e+00> : vector<8xf32>
    %9 = vector.multi_reduction <add>, %6, %cst_5 [1] : vector<8x128xf32> to vector<8xf32>
    %10 = vector.shape_cast %9 : vector<8xf32> to vector<8x1xf32>
    %cst_6 = arith.constant 1.280000e+02 : f32
    %11 = vector.broadcast %cst_6 : f32 to vector<8x1xf32>
    %12 = arith.divf %10, %11 : vector<8x1xf32>
    %13 = vector.broadcast %12 : vector<8x1xf32> to vector<8x128xf32>
    %14 = arith.subf %6, %13 : vector<8x128xf32>
    %15 = arith.mulf %14, %14 : vector<8x128xf32>
    %cst_7 = arith.constant dense<0.000000e+00> : vector<8xf32>
    %16 = vector.multi_reduction <add>, %15, %cst_7 [1] : vector<8x128xf32> to vector<8xf32>
    %17 = vector.shape_cast %16 : vector<8xf32> to vector<8x1xf32>
    %cst_8 = arith.constant 1.280000e+02 : f32
    %18 = vector.broadcast %cst_8 : f32 to vector<8x1xf32>
    %19 = arith.divf %17, %18 : vector<8x1xf32>
    %cst_9 = arith.constant 9.99999996E-13 : f32
    %20 = vector.broadcast %cst_9 : f32 to vector<8x1xf32>
    %21 = arith.addf %19, %20 : vector<8x1xf32>
    %22 = math.rsqrt %21 : vector<8x1xf32>
    %23 = vector.broadcast %22 : vector<8x1xf32> to vector<8x128xf32>
    %24 = arith.mulf %14, %23 : vector<8x128xf32>
    %25 = vector.broadcast %7 : vector<1x128xf32> to vector<8x128xf32>
    %26 = arith.mulf %24, %25 : vector<8x128xf32>
    %27 = vector.broadcast %8 : vector<1x128xf32> to vector<8x128xf32>
    %28 = arith.addf %26, %27 : vector<8x128xf32>
    %c0_10 = arith.constant 0 : index
    %c0_11 = arith.constant 0 : index
    %29 = vector.load %arg4[%c0_10, %c0_11] : memref<8x128xf32, #tpu.memory_space<vmem>>, vector<8x128xf32>
    tpu.vector_store %arg4[%c0_10, %c0_11], %28 {strides = array<i32>} : memref<8x128xf32, #tpu.memory_space<vmem>>, vector<8x128xf32>,
    return
  }
  func.func @transform_0(%arg0: i32) -> (i32, i32) {
    %c0_i32 = arith.constant 0 : i32
    %c0_i32_0 = arith.constant 0 : i32
    return %arg0, %c0_i32 : i32, i32
  }
  func.func @transform_1(%arg0: i32) -> (i32, i32) {
    %c0_i32 = arith.constant 0 : i32
    %c0_i32_0 = arith.constant 0 : i32
    %c0_i32_1 = arith.constant 0 : i32
    return %c0_i32, %c0_i32_0 : i32, i32
  }
  func.func @transform_2(%arg0: i32) -> (i32, i32) {
    %c0_i32 = arith.constant 0 : i32
    %c0_i32_0 = arith.constant 0 : i32
    %c0_i32_1 = arith.constant 0 : i32
    return %c0_i32, %c0_i32_0 : i32, i32
  }
  func.func @transform_3(%arg0: i32) -> (i32, i32) {
    %c0_i32 = arith.constant 0 : i32
    %c0_i32_0 = arith.constant 0 : i32
    return %arg0, %c0_i32 : i32, i32
  }
}

</mosaic_0001>

<llo_original>
// kernel: tpu_custom_call.1
$region0: #{tpu_custom_call.1}
  #allocation0 [shape = 'u32[]', space=smem, size = 0x4, offset = 0x4, fixed_abs, tag = 'smem constant byte address 0x4 - core index']
  #allocation1 [shape = 'u32[144,128]{1,0:T(1,128)}', space=vmem, size = 0x12000, scoped, tag = 'internal scratch']
  %s0 = inlined_call_operand.hbm [shape: f32[14,32], index: 0, kind: input, shape index: {}]
  %s1 = inlined_call_operand.hbm [shape: f32[32,128], index: 1, kind: input, shape index: {}]
  %s2 = inlined_call_operand.vmem [shape: f32[3,128], index: 2, kind: input, shape index: {}]
  %s3 = inlined_call_operand.hbm [shape: f32[14,128], index: 3, kind: output, shape index: {}]
  %s4 = sld [smem:[#allocation0]]
  $region53: #{tpu_custom_call.1} parent=0
    _
  %s6 = ssub.s32 1, %s4
  %s7 = scalar_select 0, %s6, %s4
  $region1: #{tpu_custom_call.1} parent=0
    #allocation2 [shape = 'u8[8192]{0}', space=vmem, size = 0x2000, scoped, tag = 'input window, operand 0']
    #allocation3 [shape = 's32[2]{0}', space=sflag, size = 0x8, scoped, tag = 'scoped memory for tpu_custom_call.1']
    #allocation4 [shape = 's32[2]{0}', space=sflag, size = 0x8, scoped, tag = 'scoped memory for tpu_custom_call.1']
    #allocation5 [shape = 'u8[16384]{0}', space=vmem, size = 0x4000, scoped, tag = 'input window, operand 1, single buffered']
    #allocation6 [shape = 's32[1]{0}', space=sflag, size = 0x4, scoped, tag = 'scoped memory for tpu_custom_call.1']
    #allocation7 [shape = 'u8[8192]{0}', space=vmem, size = 0x2000, scoped, tag = 'output window, operand 0']
    %8 = vsyncpa [#allocation3], 0
    %s9 = scalar_lea.sflag [#allocation3], 1
    %10 = vsyncpa %s9, 0
    %11 = vsyncpa [#allocation6], 0
    %12 = vsyncpa [#allocation4], 0
    %s13 = scalar_lea.sflag [#allocation4], 1
    %14 = vsyncpa %s13, 0
    loop: start=0, step=1, limit=4
    $region2: #{tpu_custom_call.1} parent=1 // loop_pre_header
      _
    $region3: #{tpu_custom_call.1} parent=1 // loop_header
      %s16 = sphi 0, %s20
      %p17 = scmp.ge.s32.totalorder %s16, 4
      %s26 = sphi 0, %s28
      %s29 = sphi 0, %s26
      %s30 = sphi 0, %s29
      %s46 = sphi 0, %s30
      %s50 = sphi 0, %s50
      %s52 = sphi 0, %s50
      %s53 = sphi 0, %s52
      %s67 = sphi 0, %s53
      %s71 = sphi 0, %s71
      %s73 = sphi 0, %s71
      %s74 = sphi 0, %s73
      %s88 = sphi 0, %s74
      %s94 = sphi 0, %s96
      %s97 = sphi 0, %s94
      %s98 = sphi 0, %s97
      %s114 = sphi 0, %s98
    $region4: #{tpu_custom_call.1} parent=1 // loop_header_branch
      %19 = sbr.rel (%p17) target = $region8
    $region5: #{tpu_custom_call.1} parent=1 // loop_body
      %s21 = ssub.s32 %s16, 1
      %s22 = ssub.s32 %s16, 2
      %s23 = sadd.s32 %s16, 1
      %s24 = ssub.s32 %s16, %s23
      %p25 = scmp.eq.s32.totalorder %s24, 0
      %s27 = sadd.s32 %s26, 1
      %s28 = scalar_select %p25, %s26, %s27
      %p31 = pneg %p25
      %p32 = scmp.eq.s32.totalorder %s16, 1
      %p33 = por %p31, %p32
      %p34 = scmp.ne.s32.totalorder %s26, %s29
      %p35 = scmp.eq.s32.totalorder %s16, 0
      %p36 = por %p34, %p35
      %p37 = scmp.ne.s32.totalorder %s26, %s29
      %p38 = scmp.eq.s32.totalorder %s21, 1
      %p39 = por %p37, %p38
      %p40 = scmp.ne.s32.totalorder %s29, %s30
      %p41 = scmp.eq.s32.totalorder %s21, 0
      %p42 = por %p40, %p41
      %p43 = scmp.ne.s32.totalorder %s29, %s30
      %p44 = scmp.eq.s32.totalorder %s22, 1
      %p45 = por %p43, %p44
      %p47 = scmp.ne.s32.totalorder %s30, %s46
      %p48 = scmp.eq.s32.totalorder %s22, 0
      %p49 = por %p47, %p48
      %s51 = sadd.s32 %s50, 1
      %p54 = scmp.eq.s32.totalorder %s16, 1
      %p55 = scmp.ne.s32.totalorder %s50, %s52
      %p56 = scmp.eq.s32.totalorder %s16, 0
      %p57 = por %p55, %p56
      %p58 = scmp.ne.s32.totalorder %s50, %s52
      %p59 = scmp.eq.s32.totalorder %s21, 1
      %p60 = por %p58, %p59
      %p61 = scmp.ne.s32.totalorder %s52, %s53
      %p62 = scmp.eq.s32.totalorder %s21, 0
      %p63 = por %p61, %p62
      %p64 = scmp.ne.s32.totalorder %s52, %s53
      %p65 = scmp.eq.s32.totalorder %s22, 1
      %p66 = por %p64, %p65
      %p68 = scmp.ne.s32.totalorder %s53, %s67
      %p69 = scmp.eq.s32.totalorder %s22, 0
      %p70 = por %p68, %p69
      %s72 = sadd.s32 %s71, 1
      %p75 = scmp.eq.s32.totalorder %s16, 1
      %p76 = scmp.ne.s32.totalorder %s71, %s73
      %p77 = scmp.eq.s32.totalorder %s16, 0
      %p78 = por %p76, %p77
      %p79 = scmp.ne.s32.totalorder %s71, %s73
      %p80 = scmp.eq.s32.totalorder %s21, 1
      %p81 = por %p79, %p80
      %p82 = scmp.ne.s32.totalorder %s73, %s74
      %p83 = scmp.eq.s32.totalorder %s21, 0
      %p84 = por %p82, %p83
      %p85 = scmp.ne.s32.totalorder %s73, %s74
      %p86 = scmp.eq.s32.totalorder %s22, 1
      %p87 = por %p85, %p86
      %p89 = scmp.ne.s32.totalorder %s74, %s88
      %p90 = scmp.eq.s32.totalorder %s22, 0
      %p91 = por %p89, %p90
      %s92 = ssub.s32 %s16, %s23
      %p93 = scmp.eq.s32.totalorder %s92, 0
      %s95 = sadd.s32 %s94, 1
      %s96 = scalar_select %p93, %s94, %s95
      %p99 = pneg %p93
      %p100 = scmp.eq.s32.totalorder %s16, 1
      %p101 = por %p99, %p100
      %p102 = scmp.ne.s32.totalorder %s94, %s97
      %p103 = scmp.eq.s32.totalorder %s16, 0
      %p104 = por %p102, %p103
      %p105 = scmp.ne.s32.totalorder %s94, %s97
      %p106 = scmp.eq.s32.totalorder %s21, 1
      %p107 = por %p105, %p106
      %p108 = scmp.ne.s32.totalorder %s97, %s98
      %p109 = scmp.eq.s32.totalorder %s21, 0
      %p110 = por %p108, %p109
      %p111 = scmp.ne.s32.totalorder %s97, %s98
      %p112 = scmp.eq.s32.totalorder %s22, 1
      %p113 = por %p111, %p112
      %p115 = scmp.ne.s32.totalorder %s98, %s114
      %p116 = scmp.eq.s32.totalorder %s22, 0
      %p117 = por %p115, %p116
      %p118 = scmp.le.s32.totalorder 1, %s16
      %p119 = scmp.lt.s32.totalorder %s16, 3
      %p120 = pnand %p118, %p119
      %p121 = pneg %p120
      // Predicated region
      $region9: #{tpu_custom_call.1} parent=5 // pred_check
        _
      $region10: #{tpu_custom_call.1} parent=5 // pred_check_branch
        %123 = sbr.rel (%p120) target = $region12
      $region11: #{tpu_custom_call.1} parent=5 // pred_region
        %s124 = ssub.s32 %s16, 1
        // Predicated region
        $region13: #{tpu_custom_call.1} parent=11 // pred_check
          %p125 = pneg %p63
        $region14: #{tpu_custom_call.1} parent=11 // pred_check_branch
          %127 = sbr.rel (%p125) target = $region16
        $region15: #{tpu_custom_call.1} parent=11 // pred_region
          %s129 = ssub.s32 512, 512
          %130 = vsyncadd [#allocation6], %s129
          %s131 = sshll.u32 [#allocation5], 4
          %s132 = int_to_ptr.vmem [resolvable:$true] %s131
          %137 = dma.hbm_to_vmem [thread:$0]  %s1, 512, %s132, [#allocation6], 128, 128, 8
        $region16: #{tpu_custom_call.1} parent=11 // pred_fallthru
          _
        // Predicated region
        $region17: #{tpu_custom_call.1} parent=11 // pred_check
          %p138 = pneg %p84
        $region18: #{tpu_custom_call.1} parent=11 // pred_check_branch
          %140 = sbr.rel (%p138) target = $region20
        $region19: #{tpu_custom_call.1} parent=11 // pred_region
          _
        $region20: #{tpu_custom_call.1} parent=11 // pred_fallthru
          _
      $region12: #{tpu_custom_call.1} parent=5 // pred_fallthru
        _
      %p141 = scmp.lt.s32.totalorder %s16, 2
      // Predicated region
      $region21: #{tpu_custom_call.1} parent=5 // pred_check
        %p142 = pneg %p141
      $region22: #{tpu_custom_call.1} parent=5 // pred_check_branch
        %144 = sbr.rel (%p142) target = $region24
      $region23: #{tpu_custom_call.1} parent=5 // pred_region
        // Predicated region
        $region25: #{tpu_custom_call.1} parent=23 // pred_check
          %p145 = pneg %p36
        $region26: #{tpu_custom_call.1} parent=23 // pred_check_branch
          %147 = sbr.rel (%p145) target = $region28
        $region27: #{tpu_custom_call.1} parent=23 // pred_region
          %s148 = sand.u32 %s26, 1
          %s149 = scalar_lea.sflag [#allocation3], %s148
          %s150 = sand.u32 %s26, 1
          %s151 = smul.addr %s150, 8
          %s152 = scalar_lea.vmem [#allocation2], %s151
          %s154 = ssub.s32 128, 128
          %155 = vsyncadd %s149, %s154
          %s156 = smul.addr %s16, 128
          %s157 = scalar_lea.hbm %s0, %s156
          %s159 = sshll.u32 %s152, 4
          %s160 = int_to_ptr.vmem [resolvable:$true] %s159
          %162 = dma.hbm_to_vmem [thread:$0]  %s157, 128, %s160, %s149
        $region28: #{tpu_custom_call.1} parent=23 // pred_fallthru
          _
      $region24: #{tpu_custom_call.1} parent=5 // pred_fallthru
        _
      %p163 = scmp.le.s32.totalorder 1, %s16
      %p164 = scmp.lt.s32.totalorder %s16, 3
      %p165 = pnand %p163, %p164
      %p166 = pneg %p165
      // Predicated region
      $region29: #{tpu_custom_call.1} parent=5 // pred_check
        _
      $region30: #{tpu_custom_call.1} parent=5 // pred_check_branch
        %168 = sbr.rel (%p165) target = $region32
      $region31: #{tpu_custom_call.1} parent=5 // pred_region
        %s169 = ssub.s32 %s16, 1
        %s170 = sand.u32 %s29, 1
        %s171 = scalar_lea.sflag [#allocation3], %s170
        %s172 = sand.u32 %s29, 1
        %s173 = smul.addr %s172, 8
        %s174 = scalar_lea.vmem [#allocation2], %s173
        // Predicated region
        $region33: #{tpu_custom_call.1} parent=31 // pred_check
          %p175 = pneg %p42
        $region34: #{tpu_custom_call.1} parent=31 // pred_check_branch
          %177 = sbr.rel (%p175) target = $region36
        $region35: #{tpu_custom_call.1} parent=31 // pred_region
          %178 = dma.done %s171, 128
        $region36: #{tpu_custom_call.1} parent=31 // pred_fallthru
          _
        // Predicated region
        $region37: #{tpu_custom_call.1} parent=31 // pred_check
          %p179 = pneg %p63
        $region38: #{tpu_custom_call.1} parent=31 // pred_check_branch
          %181 = sbr.rel (%p179) target = $region40
        $region39: #{tpu_custom_call.1} parent=31 // pred_region
          %182 = dma.done [#allocation6], 512
        $region40: #{tpu_custom_call.1} parent=31 // pred_fallthru
          _
        %s183 = sand.u32 %s29, 1
        %s184 = scalar_lea.sflag [#allocation3], %s183
        %s185 = sand.u32 %s29, 1
        %s186 = smul.addr %s185, 8
        %s187 = scalar_lea.vmem [#allocation2], %s186
        %p188 = pneg %p42
        %p189 = pneg %p39
        %p190 = pneg %p63
        %p191 = pneg %p60
        %p192 = pneg %p84
        %p193 = pneg %p81
        %p194 = pneg %p110
        %p195 = pneg %p107
        %s196 = sand.u32 %s97, 1
        %s197 = scalar_lea.sflag [#allocation4], %s196
        %s198 = sand.u32 %s97, 1
        %s199 = smul.addr %s198, 8
        %s200 = scalar_lea.vmem [#allocation7], %s199
        %v201 = vld [vmem:[%s174] sm:$0xff]
        %v202 = vld [vmem:[#allocation5] sm:$0xff]
        %v203 = vld [vmem:[#allocation5 + $0x8] sm:$0xff]
        %v204 = vld [vmem:[#allocation5 + $0x10] sm:$0xff]
        %v205 = vld [vmem:[#allocation5 + $0x18] sm:$0xff]
        %v206 = vld [vmem:[%s2] sm:$0x7]
        %v207 = vlaneseq
        %v208 = vshrl.u32 %v207, 7
        %v209 = vsub.s32 0, %v208
        %v210 = vrot.slane %v206, %v209
        %vm211 = vcmask 261120
        %v213 = vsel %vm211, %v201, 0
        %215 = vmatprep.subr.mxu0 0.0
        %216 = vmatpush1.msra.mxu0 %v202
        %217 = vmatprep.subr.mxu0 0.0
        %218 = vmatpush1.msra.mxu0 %v203
        %219 = vmatprep.subr.mxu0 0.0
        %220 = vmatpush1.msra.mxu0 %v204
        %221 = vmatprep.subr.mxu0 0.0
        %222 = vmatpush1.msra.mxu0 %v205
        %223 = vmatprep.subr.mxu0 0.0
        %224 = vmatpush1.msra.mxu0 0.0
        %225 = vmatprep.subr.mxu0 0.0
        %226 = vmatpush1.msra.mxu0 0.0
        %227 = vmatprep.subr.mxu0 0.0
        %228 = vmatpush1.msra.mxu0 0.0
        %229 = vmatprep.subr.mxu0 0.0
        %230 = vmatpush1.msra.mxu0 0.0
        %231 = vmatprep.subr.mxu0 0.0
        %232 = vmatpush1.msra.mxu0 0.0
        %233 = vmatprep.subr.mxu0 0.0
        %234 = vmatpush1.msra.mxu0 0.0
        %235 = vmatprep.subr.mxu0 0.0
        %236 = vmatpush1.msra.mxu0 0.0
        %237 = vmatprep.subr.mxu0 0.0
        %238 = vmatpush1.msra.mxu0 0.0
        %239 = vmatprep.subr.mxu0 0.0
        %240 = vmatpush1.msra.mxu0 0.0
        %241 = vmatprep.subr.mxu0 0.0
        %242 = vmatpush1.msra.mxu0 0.0
        %243 = vmatprep.subr.mxu0 0.0
        %244 = vmatpush1.msra.mxu0 0.0
        %245 = vmatprep.subr.mxu0 0.0
        %246 = vmatpush1.msra.mxu0 0.0
        %247 = vmatprep.subr.mxu0 0.0
        %248 = vmatpush1.msra.mxu0 0.0
        %249 = vmatprep.subr.mxu0 0.0
        %250 = vmatpush1.msra.mxu0 0.0
        %251 = vmatprep.subr.mxu0 0.0
        %252 = vmatpush1.msra.mxu0 0.0
        %253 = vmatprep.subr.mxu0 0.0
        %254 = vmatpush1.msra.mxu0 0.0
        %255 = vmatprep.subr.mxu0 0.0
        %256 = vmatpush1.msra.mxu0 0.0
        %257 = vmatprep.subr.mxu0 0.0
        %258 = vmatpush1.msra.mxu0 0.0
        %259 = vmatprep.subr.mxu0 0.0
        %260 = vmatpush1.msra.mxu0 0.0
        %261 = vmatprep.subr.mxu0 0.0
        %262 = vmatpush1.msra.mxu0 0.0
        %263 = vmatprep.subr.mxu0 0.0
        %264 = vmatpush1.msra.mxu0 0.0
        %265 = vmatprep.subr.mxu0 0.0
        %266 = vmatpush1.msra.mxu0 0.0
        %267 = vmatprep.subr.mxu0 0.0
        %268 = vmatpush1.msra.mxu0 0.0
        %269 = vmatprep.subr.mxu0 0.0
        %270 = vmatpush1.msra.mxu0 0.0
        %271 = vmatprep.subr.mxu0 0.0
        %272 = vmatpush1.msra.mxu0 0.0
        %273 = vmatprep.subr.mxu0 0.0
        %274 = vmatpush1.msra.mxu0 0.0
        %275 = vmatprep.subr.mxu0 0.0
        %276 = vmatpush1.msra.mxu0 0.0
        %277 = vmatprep.subr.mxu0 0.0
        %278 = vmatpush1.msra.mxu0 0.0
        %279 = vmatprep.mubr.f32.mxu0 0.0
        %280 = vmatmul.mubr.f32.gmra.mrb[0].mxu0 %v213
        %v281 = vpop.f32.mrb[0].mxu0
        %v282 = vadd.f32 %v210, %v281
        %v283 = vpop.f32.mrb[0].mxu0
        %284 = vdwg.mxu0
        %285 = vadd.xlane.f32.xlu0 %v282
        %v286 = vpop.xlane.xlu0 %285
        %v287 = vrcp.pop 128.0
        %v288 = vmul.f32 %v286, %v287
        %v289 = vsub.f32 %v282, %v288
        %v290 = vmul.f32 %v289, %v289
        %291 = vadd.xlane.f32.xlu0 %v290
        %v292 = vpop.xlane.xlu0 %291
        %v293 = vmul.f32 %v292, %v287
        %v294 = vadd.f32 %v293, 1e-12
        %v295 = vrsqrt.pop %v294
        %v296 = vmul.f32 %v289, %v295
        %v297 = vlaneseq
        %v298 = vshrl.u32 %v297, 7
        %v299 = vsub.s32 1, %v298
        %v300 = vrot.slane %v206, %v299
        %v301 = vmul.f32 %v296, %v300
        %v302 = vlaneseq
        %v303 = vshrl.u32 %v302, 7
        %v304 = vsub.s32 2, %v303
        %v305 = vrot.slane %v206, %v304
        %v306 = vadd.f32 %v301, %v305
        %307 = vst [vmem:[%s200] sm:$0xff] %v306
        %s308 = sand.u32 %s97, 1
        %s309 = scalar_lea.sflag [#allocation4], %s308
        %s310 = sand.u32 %s97, 1
        %s311 = smul.addr %s310, 8
        %s312 = scalar_lea.vmem [#allocation7], %s311
        // Predicated region
        $region41: #{tpu_custom_call.1} parent=31 // pred_check
          %p313 = pneg %p107
        $region42: #{tpu_custom_call.1} parent=31 // pred_check_branch
          %315 = sbr.rel (%p313) target = $region44
        $region43: #{tpu_custom_call.1} parent=31 // pred_region
          %s317 = ssub.s32 128, 128
          %318 = vsyncadd %s309, %s317
          %s319 = smul.addr %s21, 128
          %s320 = scalar_lea.hbm %s3, %s319
          %s322 = sshll.u32 %s312, 4
          %s323 = int_to_ptr.vmem [resolvable:$true] %s322
          %325 = dma.vmem_to_hbm [thread:$0]  %s323, 128, %s320, %s309
        $region44: #{tpu_custom_call.1} parent=31 // pred_fallthru
          _
      $region32: #{tpu_custom_call.1} parent=5 // pred_fallthru
        _
      %p326 = scmp.le.s32.totalorder 2, %s16
      // Predicated region
      $region45: #{tpu_custom_call.1} parent=5 // pred_check
        %p327 = pneg %p326
      $region46: #{tpu_custom_call.1} parent=5 // pred_check_branch
        %329 = sbr.rel (%p327) target = $region48
      $region47: #{tpu_custom_call.1} parent=5 // pred_region
        %s330 = ssub.s32 %s16, 2
        // Predicated region
        $region49: #{tpu_custom_call.1} parent=47 // pred_check
          %p331 = pneg %p113
        $region50: #{tpu_custom_call.1} parent=47 // pred_check_branch
          %333 = sbr.rel (%p331) target = $region52
        $region51: #{tpu_custom_call.1} parent=47 // pred_region
          %s334 = sand.u32 %s98, 1
          %s335 = scalar_lea.sflag [#allocation4], %s334
          %s336 = sand.u32 %s98, 1
          %s337 = smul.addr %s336, 8
          %s338 = scalar_lea.vmem [#allocation7], %s337
          %339 = dma.done %s335, 128
        $region52: #{tpu_custom_call.1} parent=47 // pred_fallthru
          _
      $region48: #{tpu_custom_call.1} parent=5 // pred_fallthru
        _
    $region6: #{tpu_custom_call.1} parent=1 // loop_footer
      %s20 = sadd.s32 1, %s16
    $region7: #{tpu_custom_call.1} parent=1 // loop_footer_branch
      %15 = sbr.rel target = $region3
    $region8: #{tpu_custom_call.1} parent=1 // loop_exit
      _
    %340 = vsyncpa [#allocation3], 1
    %s341 = scalar_lea.sflag [#allocation3], 1
    %342 = vsyncpa %s341, 1
    %343 = vsyncpa [#allocation6], 1
    %344 = vsyncpa [#allocation4], 1
    %s345 = scalar_lea.sflag [#allocation4], 1
    %346 = vsyncpa %s345, 1

</llo_original>
